<compile_context>
chip_gen: v7x
topology: tpu7x:2x2x1
jax: 0.10.0
libtpu: 0.0.40
codegen_flags: <defaults>
</compile_context>

<pallas_src>
import jax
import jax.numpy as jnp
from jax.experimental import pallas as pl
from jax.experimental.pallas import tpu as pltpu


def _round_up(n, m):
    return ((n + m - 1) // m) * m


# ---------------------------------------------------------------------------
# Kernel: one fused, gate-folded 2-layer MLP over a (tm, K) activation tile.
# ---------------------------------------------------------------------------
def _fused_expert_kernel(x_ref, hb_ref, w1_ref, w2_ref, b2_ref, o_ref):
    # x_ref : (1, tm, K)   activation tile (compute dtype, e.g. bf16)
    # hb_ref: (1, 1, Hp)   per-batch hidden bias (f32) = b1cat (+ text @ W1_text)
    # w1_ref: (K, Hp)      expert-concatenated first-layer weights (resident)
    # w2_ref: (Hp, Op)     gate-folded, expert-concatenated second-layer weights
    # b2_ref: (1, Op)      gate-weighted second-layer bias (f32)
    # o_ref : (1, tm, Op)  output tile (f32, lane-dense Op)
    h = jnp.dot(x_ref[0], w1_ref[...], preferred_element_type=jnp.float32)
    h = jnp.maximum(h + hb_ref[0], 0.0)
    y = jnp.dot(h.astype(w2_ref.dtype), w2_ref[...],
                preferred_element_type=jnp.float32)
    o_ref[0] = (y + b2_ref[...]).astype(o_ref.dtype)


def _run_fused(x, hidden_bias, w1, w2, b2_eff, *, out_dtype=jnp.float32):
    """x: (B, S, K); hidden_bias: (B, Hp); w1: (K, Hp); w2: (Hp, Op); b2: (1, Op)."""
    B, S, K = x.shape
    Hp = w1.shape[-1]
    Op = w2.shape[-1]
    # Tile the sequence/M dimension to bound VMEM and enable pipelining /
    # megacore sharding; 512 rows ~ 85% of HBM roofline in tile sweeps.
    # If we tile, keep the tile sublane-aligned (multiple of 8).
    tm = S if S <= 512 else 512
    grid = (B, pl.cdiv(S, tm))
    hb = hidden_bias.astype(jnp.float32).reshape(B, 1, Hp)

    return pl.pallas_call(
        _fused_expert_kernel,
        out_shape=jax.ShapeDtypeStruct((B, S, Op), out_dtype),
        grid_spec=pltpu.PrefetchScalarGridSpec(
            num_scalar_prefetch=0,
            grid=grid,
            in_specs=[
                pl.BlockSpec((1, tm, K), lambda b, i: (b, i, 0)),   # activations
                pl.BlockSpec((1, 1, Hp), lambda b, i: (b, 0, 0)),   # hidden bias
                pl.BlockSpec((K, Hp), lambda b, i: (0, 0)),         # W1 (resident)
                pl.BlockSpec((Hp, Op), lambda b, i: (0, 0)),        # W2 (resident)
                pl.BlockSpec((1, Op), lambda b, i: (0, 0)),         # b2
            ],
            out_specs=pl.BlockSpec((1, tm, Op), lambda b, i: (b, i, 0)),
        ),
        compiler_params=pltpu.CompilerParams(
            dimension_semantics=("parallel", "parallel"),  # no reduction axis left
            vmem_limit_bytes=48 * 1024 * 1024,             # safe on v7x's 64 MiB
        ),
    )(x, hb, w1, w2, b2_eff)


# ---------------------------------------------------------------------------
# Weight preparation: fuse E experts into one wide MLP (done once, tiny).
# ---------------------------------------------------------------------------
def _prepare_fused_weights(w1, b1, w2, b2, gate_w, compute_dtype):
    """w1:(E,K,H) b1:(E,H) w2:(E,H,O) b2:(E,O) gate_w:(E,) ->
       w1cat:(K,Hp) b1cat:(Hp,) w2cat:(Hp,Op) b2_eff:(1,Op), O."""
    E, K, H = w1.shape
    O = w2.shape[-1]
    Hp = _round_up(E * H, 128)   # lane-dense hidden dim
    Op = _round_up(O, 128)       # lane-dense output dim (unmasked stores)

    # Layer 1: concat experts along the hidden (output) dim.
    w1cat = jnp.transpose(w1, (1, 0, 2)).reshape(K, E * H)
    w1cat = jnp.pad(w1cat, ((0, 0), (0, Hp - E * H)))
    b1cat = jnp.pad(b1.reshape(E * H), (0, Hp - E * H)).astype(jnp.float32)

    # Layer 2: fold the gate into the weights (tiny H*O multiply instead of an
    # M*O multiply per expert), concat experts along rows.
    w2g = (w2 * gate_w[:, None, None]).reshape(E * H, O)
    w2cat = jnp.pad(w2g, ((0, Hp - E * H), (0, Op - O)))
    b2_eff = jnp.pad(jnp.einsum("e,eo->o", gate_w, b2),
                     (0, Op - O)).astype(jnp.float32).reshape(1, Op)

    return (w1cat.astype(compute_dtype), b1cat,
            w2cat.astype(compute_dtype), b2_eff, O)


# ---------------------------------------------------------------------------
# Forward pass mirroring ExpertPool.forward (3-D visual / 3-D text case).
# ---------------------------------------------------------------------------
def expert_pool_forward(visual_features, text_features, params,
                        *, compute_dtype=jnp.bfloat16):
    w1v, b1v, w2v, b2v = params["visual"]
    w1c, b1c, w2c, b2c = params["combined"]
    gate_w = jax.nn.softmax(params["gate_logits"].astype(jnp.float32))

    B, Sv, Dv = visual_features.shape
    use_combined = (
        text_features is not None
        and text_features.ndim == 3
        and Dv != text_features.shape[-1]
        and Dv + text_features.shape[-1] == w1c.shape[1]
    )

    if use_combined:
        w1cat, b1cat, w2cat, b2_eff, O = _prepare_fused_weights(
            w1c, b1c, w2c, b2c, gate_w, compute_dtype)
        # torch: cat([visual, text[:, 0, :] broadcast per position]) @ W1.
        # text[:, 0, :] is identical for every visual position of a batch, so
        # its contribution is a per-batch hidden bias: no (B*Sv, Dt) concat in HBM.
        w1_main = w1cat[:Dv]          # multiplies the streamed visual activations
        w1_text = w1cat[Dv:]          # multiplies text[:, 0, :] once per batch
        txt0 = text_features[:, 0, :].astype(compute_dtype)
        hidden_bias = jnp.dot(txt0, w1_text,
                              preferred_element_type=jnp.float32) + b1cat[None, :]
    else:
        # mlp_visual branch (text is None or dims don't trigger the combined path)
        w1_main, b1cat, w2cat, b2_eff, O = _prepare_fused_weights(
            w1v, b1v, w2v, b2v, gate_w, compute_dtype)
        hidden_bias = jnp.broadcast_to(b1cat[None, :], (B, b1cat.shape[0]))

    x = visual_features.astype(compute_dtype)
    out_padded = _run_fused(x, hidden_bias, w1_main, w2cat, b2_eff)
    return out_padded[..., :O]


# ---------------------------------------------------------------------------
# Pure-JAX f32 per-expert reference (mirrors the torch module) for verification.
# ---------------------------------------------------------------------------
def _reference_forward(visual, text, params):
    w1v, b1v, w2v, b2v = params["visual"]
    w1c, b1c, w2c, b2c = params["combined"]
    gate_w = jax.nn.softmax(params["gate_logits"])
    B, Sv, Dv = visual.shape
    use_combined = (text is not None and text.ndim == 3
                    and Dv != text.shape[-1]
                    and Dv + text.shape[-1] == w1c.shape[1])
    if use_combined:
        Dt = text.shape[-1]
        first_text = jnp.broadcast_to(text[:, 0:1, :], (B, Sv, Dt))
        x = jnp.concatenate([visual, first_text], axis=-1)
        w1, b1, w2, b2 = w1c, b1c, w2c, b2c
    else:
        x = visual
        w1, b1, w2, b2 = w1v, b1v, w2v, b2v
    outs = []
    for e in range(w1.shape[0]):
        h = jnp.maximum(x @ w1[e] + b1[e], 0.0)
        outs.append(h @ w2[e] + b2[e])
    stacked = jnp.stack(outs, axis=1)            # (B, E, Sv, O)
    return jnp.einsum("bnik,n->bik", stacked, gate_w)


def _make_params(key, num_experts, input_dim, hidden_dim, output_dim):
    ks = jax.random.split(key, 5)

    def lin(k, fan_in, fan_out):
        bound = 1.0 / jnp.sqrt(fan_in)
        kw, kb = jax.random.split(k)
        w = jax.random.uniform(kw, (num_experts, fan_in, fan_out),
                               jnp.float32, -bound, bound)
        b = jax.random.uniform(kb, (num_experts, fan_out),
                               jnp.float32, -bound, bound)
        return w, b

    w1v, b1v = lin(ks[0], input_dim, hidden_dim)
    w2v, b2v = lin(ks[1], hidden_dim, output_dim)
    w1c, b1c = lin(ks[2], 2 * input_dim, hidden_dim)
    w2c, b2c = lin(ks[3], hidden_dim, output_dim)
    gate_logits = jax.random.normal(ks[4], (num_experts,), jnp.float32)
    return {
        "visual": (w1v, b1v, w2v, b2v),
        "combined": (w1c, b1c, w2c, b2c),
        "gate_logits": gate_logits,
    }


if __name__ == "__main__":
    num_experts, input_dim, hidden_dim, output_dim = 3, 32, 32, 16
    B, Sv, St = 2, 8, 4
    Dv, Dt = 40, 24  # Dv != Dt and Dv + Dt == 2*input_dim -> combined-MLP branch

    key = jax.random.PRNGKey(0)
    k_params, k_vis, k_txt, k_vis2 = jax.random.split(key, 4)
    params = _make_params(k_params, num_experts, input_dim, hidden_dim, output_dim)
    visual = jax.random.normal(k_vis, (B, Sv, Dv), jnp.float32)
    text = jax.random.normal(k_txt, (B, St, Dt), jnp.float32)

    # ---- combined-MLP branch (visual + broadcast first text row) ----
    ref = _reference_forward(visual, text, params)

    # f32 compute path: validates expert-fusion / gate-folding / padding math.
    out_f32 = jax.block_until_ready(
        expert_pool_forward(visual, text, params, compute_dtype=jnp.float32))
    assert out_f32.shape == (B, Sv, output_dim)
    assert jnp.allclose(out_f32, ref, atol=1e-2, rtol=1e-2)

    # bf16 MXU path (the fast production configuration).
    out_bf16 = jax.block_until_ready(
        expert_pool_forward(visual, text, params, compute_dtype=jnp.bfloat16))
    assert out_bf16.shape == (B, Sv, output_dim)
    assert jnp.allclose(out_bf16, ref, atol=5e-2, rtol=5e-2)

    # ---- mlp_visual branch (text_features is None) ----
    visual_only = jax.random.normal(k_vis2, (B, Sv, input_dim), jnp.float32)
    ref_v = _reference_forward(visual_only, None, params)
    out_v = jax.block_until_ready(
        expert_pool_forward(visual_only, None, params, compute_dtype=jnp.float32))
    assert out_v.shape == (B, Sv, output_dim)
    assert jnp.allclose(out_v, ref_v, atol=1e-2, rtol=1e-2)

    print("KERNEL_OK")
</pallas_src>

<mosaic_0001>
module attributes {stable_mosaic.version = 11 : i64} {
  func.func @_fused_expert_kernel(%arg0: i32, %arg1: i32, %arg2: memref<1x8x40xf32, #tpu.memory_space<vmem>>, %arg3: memref<1x1x128xf32, #tpu.memory_space<vmem>>, %arg4: memref<40x128xf32, #tpu.memory_space<vmem>>, %arg5: memref<128x128xf32, #tpu.memory_space<vmem>>, %arg6: memref<1x128xf32, #tpu.memory_space<vmem>>, %arg7: memref<1x8x128xf32, #tpu.memory_space<vmem>>) attributes {dimension_semantics = [#tpu.dimension_semantics<parallel>, #tpu.dimension_semantics<parallel>], iteration_bounds = array<i64: 2, 1>, scalar_prefetch = 0 : i64, scratch_operands = 0 : i64, tpu.core_type = #tpu.core_type<tc>, window_params = [{transform_indices = @transform_0, window_bounds = array<i64: 1, 8, 40>}, {transform_indices = @transform_1, window_bounds = array<i64: 1, 1, 128>}, {pipeline_mode = #tpu.pipeline_mode<synchronous>, transform_indices = @transform_2, window_bounds = array<i64: 40, 128>}, {pipeline_mode = #tpu.pipeline_mode<synchronous>, transform_indices = @transform_3, window_bounds = array<i64: 128, 128>}, {pipeline_mode = #tpu.pipeline_mode<synchronous>, transform_indices = @transform_4, window_bounds = array<i64: 1, 128>}, {transform_indices = @transform_5, window_bounds = array<i64: 1, 8, 128>}]} {
    %c0 = arith.constant 0 : index
    %c0_0 = arith.constant 0 : index
    %c0_1 = arith.constant 0 : index
    %0 = vector.load %arg2[%c0, %c0_0, %c0_1] : memref<1x8x40xf32, #tpu.memory_space<vmem>>, vector<1x8x40xf32>
    %1 = vector.shape_cast %0 : vector<1x8x40xf32> to vector<8x40xf32>
    %c0_2 = arith.constant 0 : index
    %c0_3 = arith.constant 0 : index
    %2 = vector.load %arg4[%c0_2, %c0_3] : memref<40x128xf32, #tpu.memory_space<vmem>>, vector<40x128xf32>
    %cst = arith.constant dense<0.000000e+00> : vector<8x128xf32>
    %3 = tpu.matmul %1, %2, %cst {dimension_numbers = #tpu.dot_dimension_numbers<[1], [0], [0], [1], [0, 0, 1, 1], [], []>} : vector<8x40xf32>, vector<40x128xf32>, vector<8x128xf32> -> vector<8x128xf32>
    %c0_4 = arith.constant 0 : index
    %c0_5 = arith.constant 0 : index
    %c0_6 = arith.constant 0 : index
    %4 = vector.load %arg3[%c0_4, %c0_5, %c0_6] : memref<1x1x128xf32, #tpu.memory_space<vmem>>, vector<1x1x128xf32>
    %5 = vector.shape_cast %4 : vector<1x1x128xf32> to vector<1x128xf32>
    %6 = vector.broadcast %5 : vector<1x128xf32> to vector<8x128xf32>
    %7 = arith.addf %3, %6 : vector<8x128xf32>
    %cst_7 = arith.constant 0.000000e+00 : f32
    %8 = vector.broadcast %cst_7 : f32 to vector<8x128xf32>
    %9 = arith.maximumf %7, %8 : vector<8x128xf32>
    %c0_8 = arith.constant 0 : index
    %c0_9 = arith.constant 0 : index
    %10 = vector.load %arg5[%c0_8, %c0_9] : memref<128x128xf32, #tpu.memory_space<vmem>>, vector<128x128xf32>
    %cst_10 = arith.constant dense<0.000000e+00> : vector<8x128xf32>
    %11 = tpu.matmul %9, %10, %cst_10 {dimension_numbers = #tpu.dot_dimension_numbers<[1], [0], [0], [1], [0, 0, 1, 1], [], []>} : vector<8x128xf32>, vector<128x128xf32>, vector<8x128xf32> -> vector<8x128xf32>
    %c0_11 = arith.constant 0 : index
    %c0_12 = arith.constant 0 : index
    %12 = vector.load %arg6[%c0_11, %c0_12] : memref<1x128xf32, #tpu.memory_space<vmem>>, vector<1x128xf32>
    %13 = vector.broadcast %12 : vector<1x128xf32> to vector<8x128xf32>
    %14 = arith.addf %11, %13 : vector<8x128xf32>
    %c0_13 = arith.constant 0 : index
    %c0_14 = arith.constant 0 : index
    %c0_15 = arith.constant 0 : index
    %15 = vector.load %arg7[%c0_13, %c0_14, %c0_15] : memref<1x8x128xf32, #tpu.memory_space<vmem>>, vector<1x8x128xf32>
    %16 = vector.shape_cast %15 : vector<1x8x128xf32> to vector<8x128xf32>
    %17 = vector.shape_cast %14 : vector<8x128xf32> to vector<1x8x128xf32>
    tpu.vector_store %arg7[%c0_13, %c0_14, %c0_15], %17 {strides = array<i32>} : memref<1x8x128xf32, #tpu.memory_space<vmem>>, vector<1x8x128xf32>,
    return
  }
  func.func @transform_0(%arg0: i32, %arg1: i32) -> (i32, i32, i32) {
    %c0_i32 = arith.constant 0 : i32
    %c0_i32_0 = arith.constant 0 : i32
    return %arg0, %arg1, %c0_i32 : i32, i32, i32
  }
  func.func @transform_1(%arg0: i32, %arg1: i32) -> (i32, i32, i32) {
    %c0_i32 = arith.constant 0 : i32
    %c0_i32_0 = arith.constant 0 : i32
    %c0_i32_1 = arith.constant 0 : i32
    return %arg0, %c0_i32, %c0_i32_0 : i32, i32, i32
  }
  func.func @transform_2(%arg0: i32, %arg1: i32) -> (i32, i32) {
    %c0_i32 = arith.constant 0 : i32
    %c0_i32_0 = arith.constant 0 : i32
    %c0_i32_1 = arith.constant 0 : i32
    return %c0_i32, %c0_i32_0 : i32, i32
  }
  func.func @transform_3(%arg0: i32, %arg1: i32) -> (i32, i32) {
    %c0_i32 = arith.constant 0 : i32
    %c0_i32_0 = arith.constant 0 : i32
    %c0_i32_1 = arith.constant 0 : i32
    return %c0_i32, %c0_i32_0 : i32, i32
  }
  func.func @transform_4(%arg0: i32, %arg1: i32) -> (i32, i32) {
    %c0_i32 = arith.constant 0 : i32
    %c0_i32_0 = arith.constant 0 : i32
    %c0_i32_1 = arith.constant 0 : i32
    return %c0_i32, %c0_i32_0 : i32, i32
  }
  func.func @transform_5(%arg0: i32, %arg1: i32) -> (i32, i32, i32) {
    %c0_i32 = arith.constant 0 : i32
    %c0_i32_0 = arith.constant 0 : i32
    return %arg0, %arg1, %c0_i32 : i32, i32, i32
  }
}

</mosaic_0001>

<llo_original>
// kernel: tpu_custom_call.1
$region0: #{tpu_custom_call.1}
  #allocation0 [shape = 'u32[]', space=smem, size = 0x4, offset = 0x4, fixed_abs, tag = 'smem constant byte address 0x4 - core index']
  #allocation1 [shape = 'u32[144,128]{1,0:T(1,128)}', space=vmem, size = 0x12000, scoped, tag = 'internal scratch']
  %s0 = inlined_call_operand.hbm [shape: f32[2,8,40], index: 0, kind: input, shape index: {}]
  %s1 = inlined_call_operand.vmem [shape: f32[2,1,128], index: 1, kind: input, shape index: {}]
  %s2 = inlined_call_operand.hbm [shape: f32[40,128], index: 2, kind: input, shape index: {}]
  %s3 = inlined_call_operand.hbm [shape: f32[128,128], index: 3, kind: input, shape index: {}]
  %s4 = inlined_call_operand.vmem [shape: f32[1,128], index: 4, kind: input, shape index: {}]
  %s5 = inlined_call_operand.hbm [shape: f32[2,8,128], index: 5, kind: output, shape index: {}]
  %s6 = sld [smem:[#allocation0]]
  $region65: #{tpu_custom_call.1} parent=0
    _
  %s8 = ssub.s32 1, %s6
  %s9 = scalar_select 0, %s8, %s6
  $region1: #{tpu_custom_call.1} parent=0
    #allocation2 [shape = 'u8[8192]{0}', space=vmem, size = 0x2000, scoped, tag = 'input window, operand 0']
    #allocation3 [shape = 's32[2]{0}', space=sflag, size = 0x8, scoped, tag = 'scoped memory for tpu_custom_call.1']
    #allocation4 [shape = 's32[2]{0}', space=sflag, size = 0x8, scoped, tag = 'scoped memory for tpu_custom_call.1']
    #allocation5 [shape = 'u8[20480]{0}', space=vmem, size = 0x5000, scoped, tag = 'input window, operand 2, single buffered']
    #allocation6 [shape = 's32[1]{0}', space=sflag, size = 0x4, scoped, tag = 'scoped memory for tpu_custom_call.1']
    #allocation7 [shape = 'u8[65536]{0}', space=vmem, size = 0x10000, scoped, tag = 'input window, operand 3, single buffered']
    #allocation8 [shape = 'u8[8192]{0}', space=vmem, size = 0x2000, scoped, tag = 'output window, operand 0']
    %10 = vsyncpa [#allocation3], 0
    %s11 = scalar_lea.sflag [#allocation3], 1
    %12 = vsyncpa %s11, 0
    %13 = vsyncpa [#allocation6], 0
    %14 = vsyncpa [#allocation4], 0
    %s15 = scalar_lea.sflag [#allocation4], 1
    %16 = vsyncpa %s15, 0
    loop: start=0, step=1, limit=4
    $region2: #{tpu_custom_call.1} parent=1 // loop_pre_header
      _
    $region3: #{tpu_custom_call.1} parent=1 // loop_header
      %s18 = sphi 0, %s22
      %p19 = scmp.ge.s32.totalorder %s18, 4
      %s25 = sphi 0, %s37
      %s26 = sphi 0, %s33
      %s27 = sphi 0, %s25
      %s28 = sphi 0, %s26
      %s29 = sphi 0, %s27
      %s30 = sphi 0, %s28
      %s42 = sphi 0, %s44
      %s45 = sphi 0, %s42
      %s46 = sphi 0, %s45
      %s62 = sphi 0, %s46
      %s68 = sphi 0, %s70
      %s71 = sphi 0, %s68
      %s72 = sphi 0, %s71
      %s88 = sphi 0, %s72
      %s92 = sphi 0, %s92
      %s94 = sphi 0, %s92
      %s95 = sphi 0, %s94
      %s109 = sphi 0, %s95
      %s113 = sphi 0, %s113
      %s115 = sphi 0, %s113
      %s116 = sphi 0, %s115
      %s130 = sphi 0, %s116
      %s134 = sphi 0, %s134
      %s136 = sphi 0, %s134
      %s137 = sphi 0, %s136
      %s151 = sphi 0, %s137
      %s159 = sphi 0, %s161
      %s162 = sphi 0, %s159
      %s163 = sphi 0, %s162
      %s179 = sphi 0, %s163
    $region4: #{tpu_custom_call.1} parent=1 // loop_header_branch
      %21 = sbr.rel (%p19) target = $region8
    $region5: #{tpu_custom_call.1} parent=1 // loop_body
      %s23 = ssub.s32 %s18, 1
      %s24 = ssub.s32 %s18, 2
      %s31 = sadd.s32 1, %s26
      %p32 = scmp.ge.s32.totalorder %s31, 1
      %s33 = scalar_select %p32, 0, %s31
      %s34 = sadd.s32 1, %s25
      %s35 = scalar_select %p32, %s34, %s25
      %p36 = scmp.ge.s32.totalorder %s35, 2
      %s37 = scalar_select %p36, 0, %s35
      %s38 = ssub.s32 %s25, %s37
      %s39 = ssub.s32 %s26, %s33
      %s40 = sor.u32 %s38, %s39
      %p41 = scmp.eq.s32.totalorder %s40, 0
      %s43 = sadd.s32 %s42, 1
      %s44 = scalar_select %p41, %s42, %s43
      %p47 = pneg %p41
      %p48 = scmp.eq.s32.totalorder %s18, 1
      %p49 = por %p47, %p48
      %p50 = scmp.ne.s32.totalorder %s42, %s45
      %p51 = scmp.eq.s32.totalorder %s18, 0
      %p52 = por %p50, %p51
      %p53 = scmp.ne.s32.totalorder %s42, %s45
      %p54 = scmp.eq.s32.totalorder %s23, 1
      %p55 = por %p53, %p54
      %p56 = scmp.ne.s32.totalorder %s45, %s46
      %p57 = scmp.eq.s32.totalorder %s23, 0
      %p58 = por %p56, %p57
      %p59 = scmp.ne.s32.totalorder %s45, %s46
      %p60 = scmp.eq.s32.totalorder %s24, 1
      %p61 = por %p59, %p60
      %p63 = scmp.ne.s32.totalorder %s46, %s62
      %p64 = scmp.eq.s32.totalorder %s24, 0
      %p65 = por %p63, %p64
      %s66 = ssub.s32 %s25, %s37
      %p67 = scmp.eq.s32.totalorder %s66, 0
      %s69 = sadd.s32 %s68, 1
      %s70 = scalar_select %p67, %s68, %s69
      %p73 = pneg %p67
      %p74 = scmp.eq.s32.totalorder %s18, 1
      %p75 = por %p73, %p74
      %p76 = scmp.ne.s32.totalorder %s68, %s71
      %p77 = scmp.eq.s32.totalorder %s18, 0
      %p78 = por %p76, %p77
      %p79 = scmp.ne.s32.totalorder %s68, %s71
      %p80 = scmp.eq.s32.totalorder %s23, 1
      %p81 = por %p79, %p80
      %p82 = scmp.ne.s32.totalorder %s71, %s72
      %p83 = scmp.eq.s32.totalorder %s23, 0
      %p84 = por %p82, %p83
      %p85 = scmp.ne.s32.totalorder %s71, %s72
      %p86 = scmp.eq.s32.totalorder %s24, 1
      %p87 = por %p85, %p86
      %p89 = scmp.ne.s32.totalorder %s72, %s88
      %p90 = scmp.eq.s32.totalorder %s24, 0
      %p91 = por %p89, %p90
      %s93 = sadd.s32 %s92, 1
      %p96 = scmp.eq.s32.totalorder %s18, 1
      %p97 = scmp.ne.s32.totalorder %s92, %s94
      %p98 = scmp.eq.s32.totalorder %s18, 0
      %p99 = por %p97, %p98
      %p100 = scmp.ne.s32.totalorder %s92, %s94
      %p101 = scmp.eq.s32.totalorder %s23, 1
      %p102 = por %p100, %p101
      %p103 = scmp.ne.s32.totalorder %s94, %s95
      %p104 = scmp.eq.s32.totalorder %s23, 0
      %p105 = por %p103, %p104
      %p106 = scmp.ne.s32.totalorder %s94, %s95
      %p107 = scmp.eq.s32.totalorder %s24, 1
      %p108 = por %p106, %p107
      %p110 = scmp.ne.s32.totalorder %s95, %s109
      %p111 = scmp.eq.s32.totalorder %s24, 0
      %p112 = por %p110, %p111
      %s114 = sadd.s32 %s113, 1
      %p117 = scmp.eq.s32.totalorder %s18, 1
      %p118 = scmp.ne.s32.totalorder %s113, %s115
      %p119 = scmp.eq.s32.totalorder %s18, 0
      %p120 = por %p118, %p119
      %p121 = scmp.ne.s32.totalorder %s113, %s115
      %p122 = scmp.eq.s32.totalorder %s23, 1
      %p123 = por %p121, %p122
      %p124 = scmp.ne.s32.totalorder %s115, %s116
      %p125 = scmp.eq.s32.totalorder %s23, 0
      %p126 = por %p124, %p125
      %p127 = scmp.ne.s32.totalorder %s115, %s116
      %p128 = scmp.eq.s32.totalorder %s24, 1
      %p129 = por %p127, %p128
      %p131 = scmp.ne.s32.totalorder %s116, %s130
      %p132 = scmp.eq.s32.totalorder %s24, 0
      %p133 = por %p131, %p132
      %s135 = sadd.s32 %s134, 1
      %p138 = scmp.eq.s32.totalorder %s18, 1
      %p139 = scmp.ne.s32.totalorder %s134, %s136
      %p140 = scmp.eq.s32.totalorder %s18, 0
      %p141 = por %p139, %p140
      %p142 = scmp.ne.s32.totalorder %s134, %s136
      %p143 = scmp.eq.s32.totalorder %s23, 1
      %p144 = por %p142, %p143
      %p145 = scmp.ne.s32.totalorder %s136, %s137
      %p146 = scmp.eq.s32.totalorder %s23, 0
      %p147 = por %p145, %p146
      %p148 = scmp.ne.s32.totalorder %s136, %s137
      %p149 = scmp.eq.s32.totalorder %s24, 1
      %p150 = por %p148, %p149
      %p152 = scmp.ne.s32.totalorder %s137, %s151
      %p153 = scmp.eq.s32.totalorder %s24, 0
      %p154 = por %p152, %p153
      %s155 = ssub.s32 %s25, %s37
      %s156 = ssub.s32 %s26, %s33
      %s157 = sor.u32 %s155, %s156
      %p158 = scmp.eq.s32.totalorder %s157, 0
      %s160 = sadd.s32 %s159, 1
      %s161 = scalar_select %p158, %s159, %s160
      %p164 = pneg %p158
      %p165 = scmp.eq.s32.totalorder %s18, 1
      %p166 = por %p164, %p165
      %p167 = scmp.ne.s32.totalorder %s159, %s162
      %p168 = scmp.eq.s32.totalorder %s18, 0
      %p169 = por %p167, %p168
      %p170 = scmp.ne.s32.totalorder %s159, %s162
      %p171 = scmp.eq.s32.totalorder %s23, 1
      %p172 = por %p170, %p171
      %p173 = scmp.ne.s32.totalorder %s162, %s163
      %p174 = scmp.eq.s32.totalorder %s23, 0
      %p175 = por %p173, %p174
      %p176 = scmp.ne.s32.totalorder %s162, %s163
      %p177 = scmp.eq.s32.totalorder %s24, 1
      %p178 = por %p176, %p177
      %p180 = scmp.ne.s32.totalorder %s163, %s179
      %p181 = scmp.eq.s32.totalorder %s24, 0
      %p182 = por %p180, %p181
      %p183 = scmp.le.s32.totalorder 1, %s18
      %p184 = scmp.lt.s32.totalorder %s18, 3
      %p185 = pnand %p183, %p184
      %p186 = pneg %p185
      // Predicated region
      $region9: #{tpu_custom_call.1} parent=5 // pred_check
        _
      $region10: #{tpu_custom_call.1} parent=5 // pred_check_branch
        %188 = sbr.rel (%p185) target = $region12
      $region11: #{tpu_custom_call.1} parent=5 // pred_region
        %s189 = ssub.s32 %s18, 1
        // Predicated region
        $region13: #{tpu_custom_call.1} parent=11 // pred_check
          %p190 = pneg %p105
        $region14: #{tpu_custom_call.1} parent=11 // pred_check_branch
          %192 = sbr.rel (%p190) target = $region16
        $region15: #{tpu_custom_call.1} parent=11 // pred_region
          %s194 = ssub.s32 640, 640
          %195 = vsyncadd [#allocation6], %s194
          %s196 = sshll.u32 [#allocation5], 4
          %s197 = int_to_ptr.vmem [resolvable:$true] %s196
          %202 = dma.hbm_to_vmem [thread:$0]  %s2, 640, %s197, [#allocation6], 128, 128, 8
        $region16: #{tpu_custom_call.1} parent=11 // pred_fallthru
          _
        // Predicated region
        $region17: #{tpu_custom_call.1} parent=11 // pred_check
          %p203 = pneg %p126
        $region18: #{tpu_custom_call.1} parent=11 // pred_check_branch
          %205 = sbr.rel (%p203) target = $region20
        $region19: #{tpu_custom_call.1} parent=11 // pred_region
          %s207 = ssub.s32 2048, 2048
          %208 = vsyncadd [#allocation6], %s207
          %s209 = sshll.u32 [#allocation7], 4
          %s210 = int_to_ptr.vmem [resolvable:$true] %s209
          %215 = dma.hbm_to_vmem [thread:$0]  %s3, 2048, %s210, [#allocation6], 128, 128, 8
        $region20: #{tpu_custom_call.1} parent=11 // pred_fallthru
          _
        // Predicated region
        $region21: #{tpu_custom_call.1} parent=11 // pred_check
          %p216 = pneg %p147
        $region22: #{tpu_custom_call.1} parent=11 // pred_check_branch
          %218 = sbr.rel (%p216) target = $region24
        $region23: #{tpu_custom_call.1} parent=11 // pred_region
          _
        $region24: #{tpu_custom_call.1} parent=11 // pred_fallthru
          _
      $region12: #{tpu_custom_call.1} parent=5 // pred_fallthru
        _
      %p219 = scmp.lt.s32.totalorder %s18, 2
      // Predicated region
      $region25: #{tpu_custom_call.1} parent=5 // pred_check
        %p220 = pneg %p219
      $region26: #{tpu_custom_call.1} parent=5 // pred_check_branch
        %222 = sbr.rel (%p220) target = $region28
      $region27: #{tpu_custom_call.1} parent=5 // pred_region
        // Predicated region
        $region29: #{tpu_custom_call.1} parent=27 // pred_check
          %p223 = pneg %p52
        $region30: #{tpu_custom_call.1} parent=27 // pred_check_branch
          %225 = sbr.rel (%p223) target = $region32
        $region31: #{tpu_custom_call.1} parent=27 // pred_region
          %s226 = sand.u32 %s42, 1
          %s227 = scalar_lea.sflag [#allocation3], %s226
          %s228 = sand.u32 %s42, 1
          %s229 = smul.addr %s228, 8
          %s230 = scalar_lea.vmem [#allocation2], %s229
          %s232 = ssub.s32 128, 128
          %233 = vsyncadd %s227, %s232
          %s234 = sadd.s32 %s26, %s25
          %s235 = smul.addr %s234, 128
          %s236 = scalar_lea.hbm %s0, %s235
          %s238 = sshll.u32 %s230, 4
          %s239 = int_to_ptr.vmem [resolvable:$true] %s238
          %241 = dma.hbm_to_vmem [thread:$0]  %s236, 128, %s239, %s227
        $region32: #{tpu_custom_call.1} parent=27 // pred_fallthru
          _
        // Predicated region
        $region33: #{tpu_custom_call.1} parent=27 // pred_check
          %p242 = pneg %p78
        $region34: #{tpu_custom_call.1} parent=27 // pred_check_branch
          %244 = sbr.rel (%p242) target = $region36
        $region35: #{tpu_custom_call.1} parent=27 // pred_region
          %p245 = scmp.lt.s32.totalorder %s25, 1
          %s246 = scalar_select %p245, %s25, 1
          %s247 = scalar_lea.vmem %s1, %s246
        $region36: #{tpu_custom_call.1} parent=27 // pred_fallthru
          _
      $region28: #{tpu_custom_call.1} parent=5 // pred_fallthru
        _
      %p248 = scmp.le.s32.totalorder 1, %s18
      %p249 = scmp.lt.s32.totalorder %s18, 3
      %p250 = pnand %p248, %p249
      %p251 = pneg %p250
      // Predicated region
      $region37: #{tpu_custom_call.1} parent=5 // pred_check
        _
      $region38: #{tpu_custom_call.1} parent=5 // pred_check_branch
        %253 = sbr.rel (%p250) target = $region40
      $region39: #{tpu_custom_call.1} parent=5 // pred_region
        %s254 = ssub.s32 %s18, 1
        %s255 = sand.u32 %s45, 1
        %s256 = scalar_lea.sflag [#allocation3], %s255
        %s257 = sand.u32 %s45, 1
        %s258 = smul.addr %s257, 8
        %s259 = scalar_lea.vmem [#allocation2], %s258
        // Predicated region
        $region41: #{tpu_custom_call.1} parent=39 // pred_check
          %p260 = pneg %p58
        $region42: #{tpu_custom_call.1} parent=39 // pred_check_branch
          %262 = sbr.rel (%p260) target = $region44
        $region43: #{tpu_custom_call.1} parent=39 // pred_region
          %263 = dma.done %s256, 128
        $region44: #{tpu_custom_call.1} parent=39 // pred_fallthru
          _
        // Predicated region
        $region45: #{tpu_custom_call.1} parent=39 // pred_check
          %p264 = pneg %p105
        $region46: #{tpu_custom_call.1} parent=39 // pred_check_branch
          %266 = sbr.rel (%p264) target = $region48
        $region47: #{tpu_custom_call.1} parent=39 // pred_region
          %267 = dma.done [#allocation6], 640
        $region48: #{tpu_custom_call.1} parent=39 // pred_fallthru
          _
        // Predicated region
        $region49: #{tpu_custom_call.1} parent=39 // pred_check
          %p268 = pneg %p126
        $region50: #{tpu_custom_call.1} parent=39 // pred_check_branch
          %270 = sbr.rel (%p268) target = $region52
        $region51: #{tpu_custom_call.1} parent=39 // pred_region
          %271 = dma.done [#allocation6], 2048
        $region52: #{tpu_custom_call.1} parent=39 // pred_fallthru
          _
        %s272 = sand.u32 %s45, 1
        %s273 = scalar_lea.sflag [#allocation3], %s272
        %s274 = sand.u32 %s45, 1
        %s275 = smul.addr %s274, 8
        %s276 = scalar_lea.vmem [#allocation2], %s275
        %p277 = pneg %p58
        %p278 = pneg %p55
        %p279 = scmp.lt.s32.totalorder %s27, 1
        %s280 = scalar_select %p279, %s27, 1
        %s281 = scalar_lea.vmem %s1, %s280
        %p282 = pneg %p84
        %p283 = pneg %p81
        %p284 = pneg %p105
        %p285 = pneg %p102
        %p286 = pneg %p126
        %p287 = pneg %p123
        %p288 = pneg %p147
        %p289 = pneg %p144
        %p290 = pneg %p175
        %p291 = pneg %p172
        %s292 = sand.u32 %s162, 1
        %s293 = scalar_lea.sflag [#allocation4], %s292
        %s294 = sand.u32 %s162, 1
        %s295 = smul.addr %s294, 8
        %s296 = scalar_lea.vmem [#allocation8], %s295
        %p297 = scmp.lt.s32.totalorder %s27, 1
        %s298 = scalar_select %p297, %s27, 1
        %s299 = scalar_lea.vmem %s1, %s298
        %v300 = vld [vmem:[%s259] sm:$0xff]
        %v301 = vld [vmem:[#allocation5] sm:$0xff]
        %v302 = vld [vmem:[#allocation5 + $0x8] sm:$0xff]
        %v303 = vld [vmem:[#allocation5 + $0x10] sm:$0xff]
        %v304 = vld [vmem:[#allocation5 + $0x18] sm:$0xff]
        %v305 = vld [vmem:[#allocation5 + $0x20] sm:$0xff]
        %v306 = vld [vmem:[%s299] sm:$0x1]
        %v308 = vlaneseq
        %v309 = vshrl.u32 %v308, 7
        %v310 = vsub.s32 0, %v309
        %v311 = vrot.slane %v306, %v310
        %vm313 = vcmask 326656
        %v315 = vsel %vm313, %v300, 0
        %317 = vmatprep.subr.mxu0 0.0
        %318 = vmatpush1.msra.mxu0 %v301
        %319 = vmatprep.subr.mxu0 0.0
        %320 = vmatpush1.msra.mxu0 %v302
        %321 = vmatprep.subr.mxu0 0.0
        %322 = vmatpush1.msra.mxu0 %v303
        %323 = vmatprep.subr.mxu0 0.0
        %324 = vmatpush1.msra.mxu0 %v304
        %325 = vmatprep.subr.mxu0 0.0
        %326 = vmatpush1.msra.mxu0 %v305
        %327 = vmatprep.subr.mxu0 0.0
        %328 = vmatpush1.msra.mxu0 0.0
        %329 = vmatprep.subr.mxu0 0.0
        %330 = vmatpush1.msra.mxu0 0.0
        %331 = vmatprep.subr.mxu0 0.0
        %332 = vmatpush1.msra.mxu0 0.0
        %333 = vmatprep.subr.mxu0 0.0
        %334 = vmatpush1.msra.mxu0 0.0
        %335 = vmatprep.subr.mxu0 0.0
        %336 = vmatpush1.msra.mxu0 0.0
        %337 = vmatprep.subr.mxu0 0.0
        %338 = vmatpush1.msra.mxu0 0.0
        %339 = vmatprep.subr.mxu0 0.0
        %340 = vmatpush1.msra.mxu0 0.0
        %341 = vmatprep.subr.mxu0 0.0
        %342 = vmatpush1.msra.mxu0 0.0
        %343 = vmatprep.subr.mxu0 0.0
        %344 = vmatpush1.msra.mxu0 0.0
        %345 = vmatprep.subr.mxu0 0.0
        %346 = vmatpush1.msra.mxu0 0.0
        %347 = vmatprep.subr.mxu0 0.0
        %348 = vmatpush1.msra.mxu0 0.0
        %349 = vmatprep.subr.mxu0 0.0
        %350 = vmatpush1.msra.mxu0 0.0
        %351 = vmatprep.subr.mxu0 0.0
        %352 = vmatpush1.msra.mxu0 0.0
        %353 = vmatprep.subr.mxu0 0.0
        %354 = vmatpush1.msra.mxu0 0.0
        %355 = vmatprep.subr.mxu0 0.0
        %356 = vmatpush1.msra.mxu0 0.0
        %357 = vmatprep.subr.mxu0 0.0
        %358 = vmatpush1.msra.mxu0 0.0
        %359 = vmatprep.subr.mxu0 0.0
        %360 = vmatpush1.msra.mxu0 0.0
        %361 = vmatprep.subr.mxu0 0.0
        %362 = vmatpush1.msra.mxu0 0.0
        %363 = vmatprep.subr.mxu0 0.0
        %364 = vmatpush1.msra.mxu0 0.0
        %365 = vmatprep.subr.mxu0 0.0
        %366 = vmatpush1.msra.mxu0 0.0
        %367 = vmatprep.subr.mxu0 0.0
        %368 = vmatpush1.msra.mxu0 0.0
        %369 = vmatprep.subr.mxu0 0.0
        %370 = vmatpush1.msra.mxu0 0.0
        %371 = vmatprep.subr.mxu0 0.0
        %372 = vmatpush1.msra.mxu0 0.0
        %373 = vmatprep.subr.mxu0 0.0
        %374 = vmatpush1.msra.mxu0 0.0
        %375 = vmatprep.subr.mxu0 0.0
        %376 = vmatpush1.msra.mxu0 0.0
        %377 = vmatprep.subr.mxu0 0.0
        %378 = vmatpush1.msra.mxu0 0.0
        %379 = vmatprep.subr.mxu0 0.0
        %380 = vmatpush1.msra.mxu0 0.0
        %381 = vmatprep.mubr.f32.mxu0 0.0
        %382 = vmatmul.mubr.f32.gmra.mrb[0].mxu0 %v315
        %v383 = vpop.f32.mrb[0].mxu0
        %v384 = vadd.f32 %v311, %v383
        %v385 = vpop.f32.mrb[0].mxu0
        %386 = vdwg.mxu0
        %v387 = vmax.f32 %v384, 0.0
        %v388 = vld [vmem:[#allocation7] sm:$0xff]
        %v389 = vld [vmem:[#allocation7 + $0x8] sm:$0xff]
        %v390 = vld [vmem:[#allocation7 + $0x10] sm:$0xff]
        %v391 = vld [vmem:[#allocation7 + $0x18] sm:$0xff]
        %v392 = vld [vmem:[#allocation7 + $0x20] sm:$0xff]
        %v393 = vld [vmem:[#allocation7 + $0x28] sm:$0xff]
        %v394 = vld [vmem:[#allocation7 + $0x30] sm:$0xff]
        %v395 = vld [vmem:[#allocation7 + $0x38] sm:$0xff]
        %v396 = vld [vmem:[#allocation7 + $0x40] sm:$0xff]
        %v397 = vld [vmem:[#allocation7 + $0x48] sm:$0xff]
        %v398 = vld [vmem:[#allocation7 + $0x50] sm:$0xff]
        %v399 = vld [vmem:[#allocation7 + $0x58] sm:$0xff]
        %v400 = vld [vmem:[#allocation7 + $0x60] sm:$0xff]
        %v401 = vld [vmem:[#allocation7 + $0x68] sm:$0xff]
        %v402 = vld [vmem:[#allocation7 + $0x70] sm:$0xff]
        %v403 = vld [vmem:[#allocation7 + $0x78] sm:$0xff]
        %v404 = vld [vmem:[%s4] sm:$0x1]
        %v406 = vlaneseq
        %v407 = vshrl.u32 %v406, 7
        %v408 = vsub.s32 0, %v407
        %v409 = vrot.slane %v404, %v408
        %411 = vmatprep.subr.mxu0 0.0
        %412 = vmatpush1.msra.mxu0 %v388
        %413 = vmatprep.subr.mxu0 0.0
        %414 = vmatpush1.msra.mxu0 %v389
        %415 = vmatprep.subr.mxu0 0.0
        %416 = vmatpush1.msra.mxu0 %v390
        %417 = vmatprep.subr.mxu0 0.0
        %418 = vmatpush1.msra.mxu0 %v391
        %419 = vmatprep.subr.mxu0 0.0
        %420 = vmatpush1.msra.mxu0 %v392
        %421 = vmatprep.subr.mxu0 0.0
        %422 = vmatpush1.msra.mxu0 %v393
        %423 = vmatprep.subr.mxu0 0.0
        %424 = vmatpush1.msra.mxu0 %v394
        %425 = vmatprep.subr.mxu0 0.0
        %426 = vmatpush1.msra.mxu0 %v395
        %427 = vmatprep.subr.mxu0 0.0
        %428 = vmatpush1.msra.mxu0 %v396
        %429 = vmatprep.subr.mxu0 0.0
        %430 = vmatpush1.msra.mxu0 %v397
        %431 = vmatprep.subr.mxu0 0.0
        %432 = vmatpush1.msra.mxu0 %v398
        %433 = vmatprep.subr.mxu0 0.0
        %434 = vmatpush1.msra.mxu0 %v399
        %435 = vmatprep.subr.mxu0 0.0
        %436 = vmatpush1.msra.mxu0 %v400
        %437 = vmatprep.subr.mxu0 0.0
        %438 = vmatpush1.msra.mxu0 %v401
        %439 = vmatprep.subr.mxu0 0.0
        %440 = vmatpush1.msra.mxu0 %v402
        %441 = vmatprep.subr.mxu0 0.0
        %442 = vmatpush1.msra.mxu0 %v403
        %443 = vmatprep.subr.mxu0 0.0
        %444 = vmatpush1.msra.mxu0 0.0
        %445 = vmatprep.subr.mxu0 0.0
        %446 = vmatpush1.msra.mxu0 0.0
        %447 = vmatprep.subr.mxu0 0.0
        %448 = vmatpush1.msra.mxu0 0.0
        %449 = vmatprep.subr.mxu0 0.0
        %450 = vmatpush1.msra.mxu0 0.0
        %451 = vmatprep.subr.mxu0 0.0
        %452 = vmatpush1.msra.mxu0 0.0
        %453 = vmatprep.subr.mxu0 0.0
        %454 = vmatpush1.msra.mxu0 0.0
        %455 = vmatprep.subr.mxu0 0.0
        %456 = vmatpush1.msra.mxu0 0.0
        %457 = vmatprep.subr.mxu0 0.0
        %458 = vmatpush1.msra.mxu0 0.0
        %459 = vmatprep.subr.mxu0 0.0
        %460 = vmatpush1.msra.mxu0 0.0
        %461 = vmatprep.subr.mxu0 0.0
        %462 = vmatpush1.msra.mxu0 0.0
        %463 = vmatprep.subr.mxu0 0.0
        %464 = vmatpush1.msra.mxu0 0.0
        %465 = vmatprep.subr.mxu0 0.0
        %466 = vmatpush1.msra.mxu0 0.0
        %467 = vmatprep.subr.mxu0 0.0
        %468 = vmatpush1.msra.mxu0 0.0
        %469 = vmatprep.subr.mxu0 0.0
        %470 = vmatpush1.msra.mxu0 0.0
        %471 = vmatprep.subr.mxu0 0.0
        %472 = vmatpush1.msra.mxu0 0.0
        %473 = vmatprep.subr.mxu0 0.0
        %474 = vmatpush1.msra.mxu0 0.0
        %475 = vmatprep.mubr.f32.mxu0 0.0
        %476 = vmatmul.mubr.f32.gmra.mrb[0].mxu0 %v387
        %v477 = vpop.f32.mrb[0].mxu0
        %v478 = vadd.f32 %v409, %v477
        %v479 = vpop.f32.mrb[0].mxu0
        %480 = vdwg.mxu0
        %481 = vst [vmem:[%s296] sm:$0xff] %v478
        %s482 = sand.u32 %s162, 1
        %s483 = scalar_lea.sflag [#allocation4], %s482
        %s484 = sand.u32 %s162, 1
        %s485 = smul.addr %s484, 8
        %s486 = scalar_lea.vmem [#allocation8], %s485
        // Predicated region
        $region53: #{tpu_custom_call.1} parent=39 // pred_check
          %p487 = pneg %p172
        $region54: #{tpu_custom_call.1} parent=39 // pred_check_branch
          %489 = sbr.rel (%p487) target = $region56
        $region55: #{tpu_custom_call.1} parent=39 // pred_region
          %s491 = ssub.s32 128, 128
          %492 = vsyncadd %s483, %s491
          %s493 = sadd.s32 %s28, %s27
          %s494 = smul.addr %s493, 128
          %s495 = scalar_lea.hbm %s5, %s494
          %s497 = sshll.u32 %s486, 4
          %s498 = int_to_ptr.vmem [resolvable:$true] %s497
          %500 = dma.vmem_to_hbm [thread:$0]  %s498, 128, %s495, %s483
        $region56: #{tpu_custom_call.1} parent=39 // pred_fallthru
          _
      $region40: #{tpu_custom_call.1} parent=5 // pred_fallthru
        _
      %p501 = scmp.le.s32.totalorder 2, %s18
      // Predicated region
      $region57: #{tpu_custom_call.1} parent=5 // pred_check
        %p502 = pneg %p501
      $region58: #{tpu_custom_call.1} parent=5 // pred_check_branch
        %504 = sbr.rel (%p502) target = $region60
      $region59: #{tpu_custom_call.1} parent=5 // pred_region
        %s505 = ssub.s32 %s18, 2
        // Predicated region
        $region61: #{tpu_custom_call.1} parent=59 // pred_check
          %p506 = pneg %p178
        $region62: #{tpu_custom_call.1} parent=59 // pred_check_branch
          %508 = sbr.rel (%p506) target = $region64
        $region63: #{tpu_custom_call.1} parent=59 // pred_region
          %s509 = sand.u32 %s163, 1
          %s510 = scalar_lea.sflag [#allocation4], %s509
          %s511 = sand.u32 %s163, 1
          %s512 = smul.addr %s511, 8
          %s513 = scalar_lea.vmem [#allocation8], %s512
          %514 = dma.done %s510, 128
        $region64: #{tpu_custom_call.1} parent=59 // pred_fallthru
          _
      $region60: #{tpu_custom_call.1} parent=5 // pred_fallthru
        _
    $region6: #{tpu_custom_call.1} parent=1 // loop_footer
      %s22 = sadd.s32 1, %s18
    $region7: #{tpu_custom_call.1} parent=1 // loop_footer_branch
      %17 = sbr.rel target = $region3
    $region8: #{tpu_custom_call.1} parent=1 // loop_exit
      _
    %515 = vsyncpa [#allocation3], 1
    %s516 = scalar_lea.sflag [#allocation3], 1
    %517 = vsyncpa %s516, 1
    %518 = vsyncpa [#allocation6], 1
    %519 = vsyncpa [#allocation4], 1
    %s520 = scalar_lea.sflag [#allocation4], 1
    %521 = vsyncpa %s520, 1

</llo_original>
